<compile_context>
chip_gen: v6e
topology: v6e:2x2x1
jax: 0.10.0
libtpu: 0.0.40
codegen_flags: <defaults>
</compile_context>

<pallas_src>
import functools

import jax
import jax.numpy as jnp
import numpy as np
from jax.experimental import pallas as pl
from jax.experimental.pallas import tpu as pltpu

PRIMITIVES = ("none", "skip_connect", "avg_pool_3x3", "max_pool_3x3")
_NEG_LARGE = -3.4028235e38   # float32 lowest; stands in for -inf padding of max pool
_BIG = 3.4028235e38


def _make_mask_table(h, w):
    """Per-pixel constants along the flattened H*W lane axis, shape (9, H*W) f32.

    rows 0-3: 0/1 validity of the {up, down, left, right} neighbour (sum path)
    rows 4-7: 0 / -BIG bias for the same neighbours (max path)
    row  8  : 1/count for count_include_pad=False avg pooling (1/4, 1/6, 1/9)
    """
    r, c = np.meshgrid(np.arange(h), np.arange(w), indexing="ij")
    r = r.reshape(-1).astype(np.float32)
    c = c.reshape(-1).astype(np.float32)
    up = (r >= 1).astype(np.float32)
    dn = (r <= h - 2).astype(np.float32)
    lf = (c >= 1).astype(np.float32)
    rt = (c <= w - 2).astype(np.float32)
    cnt = (1.0 + up + dn) * (1.0 + lf + rt)
    inv_cnt = (1.0 / cnt).astype(np.float32)

    def bias(m):  # 0 where the neighbour is valid, -BIG where it is padding
        return ((m - 1.0) * _BIG).astype(np.float32)

    tab = np.stack(
        [up, dn, lf, rt, bias(up), bias(dn), bias(lf), bias(rt), inv_cnt], axis=0)
    return jnp.asarray(tab)


def _mixed_op_kernel(w_ref, tab_ref, x_ref, o_ref, *, img_w):
    # w_ref   : SMEM (4,) f32 architecture weights
    # tab_ref : VMEM (9, HW) f32 per-pixel constants (broadcast over the bc rows)
    # x_ref   : VMEM (bc, HW) input block, HW = H*W on the lane axis
    # o_ref   : VMEM (bc, HW) output block (caller's dtype)
    hw = x_ref.shape[1]

    x = x_ref[...].astype(jnp.float32)

    up_w = tab_ref[0:1, :]
    dn_w = tab_ref[1:2, :]
    lf_w = tab_ref[2:3, :]
    rt_w = tab_ref[3:4, :]
    up_b = tab_ref[4:5, :]
    dn_b = tab_ref[5:6, :]
    lf_b = tab_ref[6:7, :]
    rt_b = tab_ref[7:8, :]
    inv_cnt = tab_ref[8:9, :]

    # Row-direction taps (lane rolls; jnp.roll semantics: result[p] = x[p - shift]).
    #   x_up[p] = x[p - W]  -> pixel one row above,  masked where r == 0
    #   x_dn[p] = x[p + W]  -> pixel one row below,  masked where r == H-1
    x_up = pltpu.roll(x, img_w, axis=1)
    x_dn = pltpu.roll(x, hw - img_w, axis=1)

    s_v = x + x_up * up_w + x_dn * dn_w                                   # zero-pad sum
    m_v = jnp.maximum(x, jnp.maximum(x_up + up_b, x_dn + dn_b))           # -inf-pad max

    # Column-direction taps on the row-reduced partials.
    s_lf = pltpu.roll(s_v, 1, axis=1)
    s_rt = pltpu.roll(s_v, hw - 1, axis=1)
    m_lf = pltpu.roll(m_v, 1, axis=1)
    m_rt = pltpu.roll(m_v, hw - 1, axis=1)

    win_sum = s_v + s_lf * lf_w + s_rt * rt_w
    win_max = jnp.maximum(m_v, jnp.maximum(m_lf + lf_b, m_rt + rt_b))

    w_skip = w_ref[1]   # skip_connect
    w_avg = w_ref[2]    # avg_pool_3x3
    w_maxp = w_ref[3]   # max_pool_3x3
    # PRIMITIVES[0] == 'none' multiplies a zero tensor and contributes nothing.

    avg_scale = w_avg * inv_cnt          # (1, HW); folds weight + divisor into one mul
    out = w_skip * x + win_sum * avg_scale + w_maxp * win_max
    o_ref[...] = out.astype(o_ref.dtype)


def _vmem_plan():
    """(target f32 block bytes, vmem_limit_bytes) tuned per TPU generation."""
    cap = None
    try:
        cap = pltpu.get_tpu_info().vmem_capacity_bytes
    except Exception:
        cap = None
    if cap is not None and cap >= 96 * 1024 * 1024:
        # v5e / v6e: 128 MiB VMEM -> bigger blocks amortise the ~0.35us/step overhead.
        return 4 << 20, 64 * 1024 * 1024
    # v7x (64 MiB physical) or unknown: stay conservative.
    return 2 << 20, 32 * 1024 * 1024


def _pick_block_rows(nc, hw, target_bytes):
    """Number of N*C rows per block: multiple of 8 (or the full dim), sized so the
    real (lane-padded) f32 footprint of one block stays near target_bytes."""
    hw_pad = -(-hw // 128) * 128          # VMEM pads the lane axis to 128
    per_row = hw_pad * 4                  # f32 compute bytes per N*C row
    cap = max(1, target_bytes // per_row)
    if cap >= nc:
        return nc                         # whole array in one block (full dim is legal)
    if cap < 8:
        return 8 if nc >= 8 else nc
    return (cap // 8) * 8


def mixed_op(x, weights):
    """Fused Pallas MixedOp: sum_k weights[k] * op_k(x) over PRIMITIVES."""
    assert x.ndim == 4, "expected NCHW input"
    n, c, h, w = x.shape
    assert h >= 2 and w >= 2, "spatial dims must be >= 2 for the 3x3 pools"
    assert weights.shape == (len(PRIMITIVES),)

    nc = n * c
    hw = h * w
    x2 = x.reshape(nc, hw)                        # pure reshape; no transpose, no cast
    weights = weights.astype(jnp.float32)         # 4 scalars -> SMEM
    tab = _make_mask_table(h, w)                  # (9, hw) f32 constants

    target_bytes, vmem_limit = _vmem_plan()
    bc = _pick_block_rows(nc, hw, target_bytes)
    grid = (pl.cdiv(nc, bc),)                     # partial tail block is fine: rows
                                                  # never mix (rolls are lane-only)

    kernel = functools.partial(_mixed_op_kernel, img_w=w)

    out2 = pl.pallas_call(
        kernel,
        out_shape=jax.ShapeDtypeStruct((nc, hw), x.dtype),
        grid_spec=pltpu.PrefetchScalarGridSpec(
            num_scalar_prefetch=0,
            grid=grid,
            in_specs=[
                pl.BlockSpec(memory_space=pltpu.MemorySpace.SMEM),   # weights (4,)
                pl.BlockSpec((9, hw), lambda i: (0, 0)),             # mask table
                pl.BlockSpec((bc, hw), lambda i: (i, 0)),            # x block
            ],
            out_specs=pl.BlockSpec((bc, hw), lambda i: (i, 0)),
        ),
        compiler_params=pltpu.CompilerParams(
            dimension_semantics=("parallel",),
            vmem_limit_bytes=vmem_limit,
        ),
    )(weights, tab, x2)
    return out2.reshape(n, c, h, w)


def _mixed_op_reference(x, weights):
    """Pure-JAX reference mirroring the chosen primitives exactly."""
    x = x.astype(jnp.float32)
    _, _, h, w = x.shape

    xp = jnp.pad(x, ((0, 0), (0, 0), (1, 1), (1, 1)))
    win_sum = sum(xp[:, :, i:i + h, j:j + w] for i in range(3) for j in range(3))
    ones = jnp.pad(jnp.ones((1, 1, h, w), jnp.float32),
                   ((0, 0), (0, 0), (1, 1), (1, 1)))
    cnt = sum(ones[:, :, i:i + h, j:j + w] for i in range(3) for j in range(3))
    avg_pool = win_sum / cnt

    xneg = jnp.pad(x, ((0, 0), (0, 0), (1, 1), (1, 1)),
                   constant_values=_NEG_LARGE)
    max_pool = None
    for i in range(3):
        for j in range(3):
            sl = xneg[:, :, i:i + h, j:j + w]
            max_pool = sl if max_pool is None else jnp.maximum(max_pool, sl)

    ops = [jnp.zeros_like(x), x, avg_pool, max_pool]
    return sum(wk * op for wk, op in zip(weights.astype(jnp.float32), ops))


if __name__ == "__main__":
    key = jax.random.PRNGKey(0)
    kx, kw = jax.random.split(key)
    n, c, h, w = 2, 4, 16, 16
    x = jax.random.normal(kx, (n, c, h, w), dtype=jnp.float32)
    weights = jax.nn.softmax(
        jax.random.normal(kw, (len(PRIMITIVES),), dtype=jnp.float32))

    out = mixed_op(x, weights)
    jax.block_until_ready(out)

    ref = _mixed_op_reference(x, weights)
    assert out.shape == x.shape and out.dtype == x.dtype
    err = float(jnp.max(jnp.abs(out.astype(jnp.float32) - ref)))
    assert jnp.allclose(out.astype(jnp.float32), ref, rtol=1e-5, atol=1e-5), err
    print("KERNEL_OK")
</pallas_src>

<mosaic_0001>
module attributes {stable_mosaic.version = 11 : i64} {
  func.func @_mixed_op_kernel(%arg0: i32, %arg1: memref<4xf32, #tpu.memory_space<smem>>, %arg2: memref<9x256xf32, #tpu.memory_space<vmem>>, %arg3: memref<8x256xf32, #tpu.memory_space<vmem>>, %arg4: memref<8x256xf32, #tpu.memory_space<vmem>>) attributes {dimension_semantics = [#tpu.dimension_semantics<parallel>], iteration_bounds = array<i64: 1>, scalar_prefetch = 0 : i64, scratch_operands = 0 : i64, tpu.core_type = #tpu.core_type<tc>, window_params = [{transform_indices = @transform_0, window_bounds = array<i64: 4>}, {pipeline_mode = #tpu.pipeline_mode<synchronous>, transform_indices = @transform_1, window_bounds = array<i64: 9, 256>}, {transform_indices = @transform_2, window_bounds = array<i64: 8, 256>}, {transform_indices = @transform_3, window_bounds = array<i64: 8, 256>}]} {
    %c0 = arith.constant 0 : index
    %c0_0 = arith.constant 0 : index
    %0 = vector.load %arg3[%c0, %c0_0] : memref<8x256xf32, #tpu.memory_space<vmem>>, vector<8x256xf32>
    %c0_1 = arith.constant 0 : index
    %c0_2 = arith.constant 0 : index
    %1 = vector.load %arg2[%c0_1, %c0_2] : memref<9x256xf32, #tpu.memory_space<vmem>>, vector<1x256xf32>
    %c1 = arith.constant 1 : index
    %c0_3 = arith.constant 0 : index
    %2 = vector.load %arg2[%c1, %c0_3] : memref<9x256xf32, #tpu.memory_space<vmem>>, vector<1x256xf32>
    %c2 = arith.constant 2 : index
    %c0_4 = arith.constant 0 : index
    %3 = vector.load %arg2[%c2, %c0_4] : memref<9x256xf32, #tpu.memory_space<vmem>>, vector<1x256xf32>
    %c3 = arith.constant 3 : index
    %c0_5 = arith.constant 0 : index
    %4 = vector.load %arg2[%c3, %c0_5] : memref<9x256xf32, #tpu.memory_space<vmem>>, vector<1x256xf32>
    %c4 = arith.constant 4 : index
    %c0_6 = arith.constant 0 : index
    %5 = vector.load %arg2[%c4, %c0_6] : memref<9x256xf32, #tpu.memory_space<vmem>>, vector<1x256xf32>
    %c5 = arith.constant 5 : index
    %c0_7 = arith.constant 0 : index
    %6 = vector.load %arg2[%c5, %c0_7] : memref<9x256xf32, #tpu.memory_space<vmem>>, vector<1x256xf32>
    %c6 = arith.constant 6 : index
    %c0_8 = arith.constant 0 : index
    %7 = vector.load %arg2[%c6, %c0_8] : memref<9x256xf32, #tpu.memory_space<vmem>>, vector<1x256xf32>
    %c7 = arith.constant 7 : index
    %c0_9 = arith.constant 0 : index
    %8 = vector.load %arg2[%c7, %c0_9] : memref<9x256xf32, #tpu.memory_space<vmem>>, vector<1x256xf32>
    %c8 = arith.constant 8 : index
    %c0_10 = arith.constant 0 : index
    %9 = vector.load %arg2[%c8, %c0_10] : memref<9x256xf32, #tpu.memory_space<vmem>>, vector<1x256xf32>
    %c16_i32 = arith.constant 16 : i32
    %10 = tpu.dynamic_rotate %0 by %c16_i32 dim 1 : vector<8x256xf32>, i32 -> vector<8x256xf32>
    %c240_i32 = arith.constant 240 : i32
    %11 = tpu.dynamic_rotate %0 by %c240_i32 dim 1 : vector<8x256xf32>, i32 -> vector<8x256xf32>
    %12 = vector.broadcast %1 : vector<1x256xf32> to vector<8x256xf32>
    %13 = arith.mulf %10, %12 : vector<8x256xf32>
    %14 = arith.addf %0, %13 : vector<8x256xf32>
    %15 = vector.broadcast %2 : vector<1x256xf32> to vector<8x256xf32>
    %16 = arith.mulf %11, %15 : vector<8x256xf32>
    %17 = arith.addf %14, %16 : vector<8x256xf32>
    %18 = vector.broadcast %5 : vector<1x256xf32> to vector<8x256xf32>
    %19 = arith.addf %10, %18 : vector<8x256xf32>
    %20 = vector.broadcast %6 : vector<1x256xf32> to vector<8x256xf32>
    %21 = arith.addf %11, %20 : vector<8x256xf32>
    %22 = arith.maximumf %19, %21 : vector<8x256xf32>
    %23 = arith.maximumf %0, %22 : vector<8x256xf32>
    %c1_i32 = arith.constant 1 : i32
    %24 = tpu.dynamic_rotate %17 by %c1_i32 dim 1 : vector<8x256xf32>, i32 -> vector<8x256xf32>
    %c255_i32 = arith.constant 255 : i32
    %25 = tpu.dynamic_rotate %17 by %c255_i32 dim 1 : vector<8x256xf32>, i32 -> vector<8x256xf32>
    %c1_i32_11 = arith.constant 1 : i32
    %26 = tpu.dynamic_rotate %23 by %c1_i32_11 dim 1 : vector<8x256xf32>, i32 -> vector<8x256xf32>
    %c255_i32_12 = arith.constant 255 : i32
    %27 = tpu.dynamic_rotate %23 by %c255_i32_12 dim 1 : vector<8x256xf32>, i32 -> vector<8x256xf32>
    %28 = vector.broadcast %3 : vector<1x256xf32> to vector<8x256xf32>
    %29 = arith.mulf %24, %28 : vector<8x256xf32>
    %30 = arith.addf %17, %29 : vector<8x256xf32>
    %31 = vector.broadcast %4 : vector<1x256xf32> to vector<8x256xf32>
    %32 = arith.mulf %25, %31 : vector<8x256xf32>
    %33 = arith.addf %30, %32 : vector<8x256xf32>
    %34 = vector.broadcast %7 : vector<1x256xf32> to vector<8x256xf32>
    %35 = arith.addf %26, %34 : vector<8x256xf32>
    %36 = vector.broadcast %8 : vector<1x256xf32> to vector<8x256xf32>
    %37 = arith.addf %27, %36 : vector<8x256xf32>
    %38 = arith.maximumf %35, %37 : vector<8x256xf32>
    %39 = arith.maximumf %23, %38 : vector<8x256xf32>
    %c1_13 = arith.constant 1 : index
    %40 = memref.load %arg1[%c1_13] : memref<4xf32, #tpu.memory_space<smem>>
    %c2_14 = arith.constant 2 : index
    %41 = memref.load %arg1[%c2_14] : memref<4xf32, #tpu.memory_space<smem>>
    %c3_15 = arith.constant 3 : index
    %42 = memref.load %arg1[%c3_15] : memref<4xf32, #tpu.memory_space<smem>>
    %43 = vector.broadcast %41 : f32 to vector<1x256xf32>
    %44 = arith.mulf %43, %9 : vector<1x256xf32>
    %45 = vector.broadcast %40 : f32 to vector<8x256xf32>
    %46 = arith.mulf %45, %0 : vector<8x256xf32>
    %47 = vector.broadcast %44 : vector<1x256xf32> to vector<8x256xf32>
    %48 = arith.mulf %33, %47 : vector<8x256xf32>
    %49 = arith.addf %46, %48 : vector<8x256xf32>
    %50 = vector.broadcast %42 : f32 to vector<8x256xf32>
    %51 = arith.mulf %50, %39 : vector<8x256xf32>
    %52 = arith.addf %49, %51 : vector<8x256xf32>
    %c0_16 = arith.constant 0 : index
    %c0_17 = arith.constant 0 : index
    %53 = vector.load %arg4[%c0_16, %c0_17] : memref<8x256xf32, #tpu.memory_space<vmem>>, vector<8x256xf32>
    tpu.vector_store %arg4[%c0_16, %c0_17], %52 {strides = array<i32>} : memref<8x256xf32, #tpu.memory_space<vmem>>, vector<8x256xf32>,
    return
  }
  func.func @transform_0(%arg0: i32) -> i32 {
    %c0_i32 = arith.constant 0 : i32
    %c0_i32_0 = arith.constant 0 : i32
    return %c0_i32 : i32
  }
  func.func @transform_1(%arg0: i32) -> (i32, i32) {
    %c0_i32 = arith.constant 0 : i32
    %c0_i32_0 = arith.constant 0 : i32
    %c0_i32_1 = arith.constant 0 : i32
    return %c0_i32, %c0_i32_0 : i32, i32
  }
  func.func @transform_2(%arg0: i32) -> (i32, i32) {
    %c0_i32 = arith.constant 0 : i32
    %c0_i32_0 = arith.constant 0 : i32
    return %arg0, %c0_i32 : i32, i32
  }
  func.func @transform_3(%arg0: i32) -> (i32, i32) {
    %c0_i32 = arith.constant 0 : i32
    %c0_i32_0 = arith.constant 0 : i32
    return %arg0, %c0_i32 : i32, i32
  }
}

</mosaic_0001>

<llo_original>
// kernel: tpu_custom_call.1
$region0: #{tpu_custom_call.1}
  #allocation0 [shape = 'u32[]', space=smem, size = 0x4, offset = 0x4, fixed_abs, tag = 'smem constant byte address 0x4 - core index']
  #allocation1 [shape = 'u32[144,128]{1,0:T(1,128)}', space=vmem, size = 0x12000, scoped, tag = 'internal scratch']
  %s0 = inlined_call_operand.hbm [shape: f32[4], index: 0, kind: input, shape index: {}]
  %s1 = inlined_call_operand.hbm [shape: f32[9,256], index: 1, kind: input, shape index: {}]
  %s2 = inlined_call_operand.hbm [shape: f32[8,256], index: 2, kind: input, shape index: {}]
  %s3 = inlined_call_operand.hbm [shape: f32[8,256], index: 3, kind: output, shape index: {}]
  %s4 = sld [smem:[#allocation0]]
  $region34: #{tpu_custom_call.1} parent=0
    _
  %s6 = ssub.s32 1, %s4
  %s7 = scalar_select 0, %s6, %s4
  $region1: #{tpu_custom_call.1} parent=0
    #allocation2 [shape = 'u8[512]{0}', space=smem, size = 0x200, scoped, tag = 'input window, operand 0, single buffered']
    #allocation3 [shape = 's32[1]{0}', space=sflag, size = 0x4, scoped, tag = 'scoped memory for tpu_custom_call.1']
    #allocation4 [shape = 's32[1]{0}', space=sflag, size = 0x4, scoped, tag = 'scoped memory for tpu_custom_call.1']
    #allocation5 [shape = 's32[1]{0}', space=sflag, size = 0x4, scoped, tag = 'scoped memory for tpu_custom_call.1']
    #allocation6 [shape = 'u8[16384]{0}', space=vmem, size = 0x4000, scoped, tag = 'input window, operand 1, single buffered']
    #allocation7 [shape = 'u8[8192]{0}', space=vmem, size = 0x2000, scoped, tag = 'input window, operand 2, single buffered']
    #allocation8 [shape = 's32[1]{0}', space=sflag, size = 0x4, scoped, tag = 'scoped memory for tpu_custom_call.1']
    #allocation9 [shape = 'u8[8192]{0}', space=vmem, size = 0x2000, scoped, tag = 'output window, operand 0, single buffered']
    %8 = vsyncpa [#allocation5], 0
    %9 = vsyncpa [#allocation3], 0
    %10 = vsyncpa [#allocation8], 0
    %11 = vsyncpa [#allocation4], 0
    // Predicated region
    $region2: #{tpu_custom_call.1} parent=1 // pred_check
      _
    $region3: #{tpu_custom_call.1} parent=1 // pred_check_branch
      %13 = sbr.rel (0) target = $region5
    $region4: #{tpu_custom_call.1} parent=1 // pred_region
      %s15 = ssub.s32 16, 16
      %16 = vsyncadd [#allocation5], %s15
      %19 = dma.hbm_to_smem %s0, 16, [#allocation2], [#allocation5]
    $region5: #{tpu_custom_call.1} parent=1 // pred_fallthru
      _
    // Predicated region
    $region6: #{tpu_custom_call.1} parent=1 // pred_check
      _
    $region7: #{tpu_custom_call.1} parent=1 // pred_check_branch
      %21 = sbr.rel (0) target = $region9
    $region8: #{tpu_custom_call.1} parent=1 // pred_region
      %s23 = ssub.s32 512, 512
      %24 = vsyncadd [#allocation3], %s23
      %s25 = sshll.u32 [#allocation6], 4
      %s26 = int_to_ptr.vmem [resolvable:$true] %s25
      %31 = dma.hbm_to_vmem [thread:$0]  %s1, 512, %s26, [#allocation3], 256, 256, 16
    $region9: #{tpu_custom_call.1} parent=1 // pred_fallthru
      _
    // Predicated region
    $region10: #{tpu_custom_call.1} parent=1 // pred_check
      _
    $region11: #{tpu_custom_call.1} parent=1 // pred_check_branch
      %33 = sbr.rel (0) target = $region13
    $region12: #{tpu_custom_call.1} parent=1 // pred_region
      %s35 = ssub.s32 256, 256
      %36 = vsyncadd [#allocation8], %s35
      %s38 = sshll.u32 [#allocation7], 4
      %s39 = int_to_ptr.vmem [resolvable:$true] %s38
      %41 = dma.hbm_to_vmem [thread:$0]  %s2, 256, %s39, [#allocation8]
    $region13: #{tpu_custom_call.1} parent=1 // pred_fallthru
      _
    // Predicated region
    $region14: #{tpu_custom_call.1} parent=1 // pred_check
      _
    $region15: #{tpu_custom_call.1} parent=1 // pred_check_branch
      %43 = sbr.rel (0) target = $region17
    $region16: #{tpu_custom_call.1} parent=1 // pred_region
      %44 = dma.done [#allocation5], 16
    $region17: #{tpu_custom_call.1} parent=1 // pred_fallthru
      _
    // Predicated region
    $region18: #{tpu_custom_call.1} parent=1 // pred_check
      _
    $region19: #{tpu_custom_call.1} parent=1 // pred_check_branch
      %46 = sbr.rel (0) target = $region21
    $region20: #{tpu_custom_call.1} parent=1 // pred_region
      %47 = dma.done [#allocation3], 512
    $region21: #{tpu_custom_call.1} parent=1 // pred_fallthru
      _
    // Predicated region
    $region22: #{tpu_custom_call.1} parent=1 // pred_check
      _
    $region23: #{tpu_custom_call.1} parent=1 // pred_check_branch
      %49 = sbr.rel (0) target = $region25
    $region24: #{tpu_custom_call.1} parent=1 // pred_region
      %50 = dma.done [#allocation8], 256
    $region25: #{tpu_custom_call.1} parent=1 // pred_fallthru
      _
    %51 = sfence
    %v52 = vld [vmem:[#allocation7] sm:$0xff]
    %v53 = vld [vmem:[#allocation7 + $0x8] sm:$0xff]
    %v54 = vld [vmem:[#allocation6] ss:$8 sm:$0x3]
    %s55 = scalar_lea.vmem [#allocation6], 1
    %v56 = vld [vmem:[%s55] ss:$8 sm:$0x3]
    %s57 = scalar_lea.vmem [#allocation6], 2
    %v58 = vld [vmem:[%s57] ss:$8 sm:$0x3]
    %s59 = scalar_lea.vmem [#allocation6], 3
    %v60 = vld [vmem:[%s59] ss:$8 sm:$0x3]
    %s61 = scalar_lea.vmem [#allocation6], 4
    %v62 = vld [vmem:[%s61] ss:$8 sm:$0x3]
    %s63 = scalar_lea.vmem [#allocation6], 5
    %v64 = vld [vmem:[%s63] ss:$8 sm:$0x3]
    %s65 = scalar_lea.vmem [#allocation6], 6
    %v66 = vld [vmem:[%s65] ss:$8 sm:$0x3]
    %s67 = scalar_lea.vmem [#allocation6], 7
    %v68 = vld [vmem:[%s67] ss:$8 sm:$0x3]
    %s69 = scalar_lea.vmem [#allocation6], 16
    %v70 = vld [vmem:[%s69] ss:$8 sm:$0x3]
    %71 = vrot.lane.b32.xlu0 %v52, 16
    %v72 = vpop.permute.xlu0 %71
    %73 = vrot.lane.b32.xlu0 %v53, 16
    %v74 = vpop.permute.xlu0 %73
    %v75 = vlaneseq
    %v76 = vand.u32 %v75, 127
    %vm77 = vcmp.lt.s32.totalorder %v76, 16
    %v78 = vsel %vm77, %v72, %v74
    %v79 = vsel %vm77, %v74, %v72
    %80 = vrot.lane.b32.xlu0 %v52, 112
    %v81 = vpop.permute.xlu0 %80
    %82 = vrot.lane.b32.xlu0 %v53, 112
    %v83 = vpop.permute.xlu0 %82
    %vm84 = vcmp.lt.s32.totalorder %v76, 112
    %v85 = vsel %vm84, %v81, %v83
    %v86 = vsel %vm84, %v83, %v81
    %v88 = vlaneseq
    %v89 = vshrl.u32 %v88, 7
    %v90 = vsub.s32 0, %v89
    %v91 = vrot.slane %v54, %v90
    %v92 = vlaneseq
    %v93 = vshrl.u32 %v92, 7
    %v94 = vsub.s32 1, %v93
    %v95 = vrot.slane %v54, %v94
    %v98 = vmul.f32 %v79, %v91
    %v99 = vmul.f32 %v78, %v95
    %v100 = vadd.f32 %v52, %v98
    %v101 = vadd.f32 %v53, %v99
    %v103 = vlaneseq
    %v104 = vshrl.u32 %v103, 7
    %v105 = vsub.s32 0, %v104
    %v106 = vrot.slane %v56, %v105
    %v107 = vlaneseq
    %v108 = vshrl.u32 %v107, 7
    %v109 = vsub.s32 1, %v108
    %v110 = vrot.slane %v56, %v109
    %v113 = vmul.f32 %v85, %v106
    %v114 = vmul.f32 %v86, %v110
    %v115 = vadd.f32 %v100, %v113
    %v116 = vadd.f32 %v101, %v114
    %v118 = vlaneseq
    %v119 = vshrl.u32 %v118, 7
    %v120 = vsub.s32 0, %v119
    %v121 = vrot.slane %v62, %v120
    %v122 = vlaneseq
    %v123 = vshrl.u32 %v122, 7
    %v124 = vsub.s32 1, %v123
    %v125 = vrot.slane %v62, %v124
    %v128 = vadd.f32 %v79, %v121
    %v129 = vadd.f32 %v78, %v125
    %v131 = vlaneseq
    %v132 = vshrl.u32 %v131, 7
    %v133 = vsub.s32 0, %v132
    %v134 = vrot.slane %v64, %v133
    %v135 = vlaneseq
    %v136 = vshrl.u32 %v135, 7
    %v137 = vsub.s32 1, %v136
    %v138 = vrot.slane %v64, %v137
    %v141 = vadd.f32 %v85, %v134
    %v142 = vadd.f32 %v86, %v138
    %v143 = vmax.f32 %v128, %v141
    %v144 = vmax.f32 %v129, %v142
    %v145 = vmax.f32 %v52, %v143
    %v146 = vmax.f32 %v53, %v144
    %147 = vrot.lane.b32.xlu0 %v115, 1
    %v148 = vpop.permute.xlu0 %147
    %149 = vrot.lane.b32.xlu0 %v116, 1
    %v150 = vpop.permute.xlu0 %149
    %vm151 = vcmp.lt.s32.totalorder %v76, 1
    %v152 = vsel %vm151, %v148, %v150
    %v153 = vsel %vm151, %v150, %v148
    %154 = vrot.lane.b32.xlu0 %v115, 127
    %v155 = vpop.permute.xlu0 %154
    %156 = vrot.lane.b32.xlu0 %v116, 127
    %v157 = vpop.permute.xlu0 %156
    %vm158 = vcmp.lt.s32.totalorder %v76, 127
    %v159 = vsel %vm158, %v155, %v157
    %v160 = vsel %vm158, %v157, %v155
    %161 = vrot.lane.b32.xlu0 %v145, 1
    %v162 = vpop.permute.xlu0 %161
    %163 = vrot.lane.b32.xlu0 %v146, 1
    %v164 = vpop.permute.xlu0 %163
    %v165 = vsel %vm151, %v162, %v164
    %v166 = vsel %vm151, %v164, %v162
    %167 = vrot.lane.b32.xlu0 %v145, 127
    %v168 = vpop.permute.xlu0 %167
    %169 = vrot.lane.b32.xlu0 %v146, 127
    %v170 = vpop.permute.xlu0 %169
    %v171 = vsel %vm158, %v168, %v170
    %v172 = vsel %vm158, %v170, %v168
    %v174 = vlaneseq
    %v175 = vshrl.u32 %v174, 7
    %v176 = vsub.s32 0, %v175
    %v177 = vrot.slane %v58, %v176
    %v178 = vlaneseq
    %v179 = vshrl.u32 %v178, 7
    %v180 = vsub.s32 1, %v179
    %v181 = vrot.slane %v58, %v180
    %v184 = vmul.f32 %v153, %v177
    %v185 = vmul.f32 %v152, %v181
    %v186 = vadd.f32 %v115, %v184
    %v187 = vadd.f32 %v116, %v185
    %v189 = vlaneseq
    %v190 = vshrl.u32 %v189, 7
    %v191 = vsub.s32 0, %v190
    %v192 = vrot.slane %v60, %v191
    %v193 = vlaneseq
    %v194 = vshrl.u32 %v193, 7
    %v195 = vsub.s32 1, %v194
    %v196 = vrot.slane %v60, %v195
    %v199 = vmul.f32 %v159, %v192
    %v200 = vmul.f32 %v160, %v196
    %v201 = vadd.f32 %v186, %v199
    %v202 = vadd.f32 %v187, %v200
    %v204 = vlaneseq
    %v205 = vshrl.u32 %v204, 7
    %v206 = vsub.s32 0, %v205
    %v207 = vrot.slane %v66, %v206
    %v208 = vlaneseq
    %v209 = vshrl.u32 %v208, 7
    %v210 = vsub.s32 1, %v209
    %v211 = vrot.slane %v66, %v210
    %v214 = vadd.f32 %v166, %v207
    %v215 = vadd.f32 %v165, %v211
    %v217 = vlaneseq
    %v218 = vshrl.u32 %v217, 7
    %v219 = vsub.s32 0, %v218
    %v220 = vrot.slane %v68, %v219
    %v221 = vlaneseq
    %v222 = vshrl.u32 %v221, 7
    %v223 = vsub.s32 1, %v222
    %v224 = vrot.slane %v68, %v223
    %v227 = vadd.f32 %v171, %v220
    %v228 = vadd.f32 %v172, %v224
    %v229 = vmax.f32 %v214, %v227
    %v230 = vmax.f32 %v215, %v228
    %v231 = vmax.f32 %v145, %v229
    %v232 = vmax.f32 %v146, %v230
    %s233 = sld [smem:[#allocation2 + $0x1]]
    %s234 = sld [smem:[#allocation2 + $0x2]]
    %s235 = sld [smem:[#allocation2 + $0x3]]
    %v236 = vstv %s234
    %v237 = vmul.f32 %v236, %v70
    %v238 = vstv %s233
    %v239 = vmul.f32 %v238, %v52
    %v240 = vmul.f32 %v238, %v53
    %v242 = vlaneseq
    %v243 = vshrl.u32 %v242, 7
    %v244 = vsub.s32 0, %v243
    %v245 = vrot.slane %v237, %v244
    %v246 = vlaneseq
    %v247 = vshrl.u32 %v246, 7
    %v248 = vsub.s32 1, %v247
    %v249 = vrot.slane %v237, %v248
    %v252 = vmul.f32 %v201, %v245
    %v253 = vmul.f32 %v202, %v249
    %v254 = vadd.f32 %v239, %v252
    %v255 = vadd.f32 %v240, %v253
    %v256 = vstv %s235
    %v257 = vmul.f32 %v256, %v231
    %v258 = vmul.f32 %v256, %v232
    %v259 = vadd.f32 %v254, %v257
    %v260 = vadd.f32 %v255, %v258
    %261 = vst [vmem:[#allocation9] sm:$0xff] %v259
    %262 = vst [vmem:[#allocation9 + $0x8] sm:$0xff] %v260
    // Predicated region
    $region26: #{tpu_custom_call.1} parent=1 // pred_check
      _
    $region27: #{tpu_custom_call.1} parent=1 // pred_check_branch
      %264 = sbr.rel (0) target = $region29
    $region28: #{tpu_custom_call.1} parent=1 // pred_region
      %s266 = ssub.s32 256, 256
      %267 = vsyncadd [#allocation4], %s266
      %s269 = sshll.u32 [#allocation9], 4
      %s270 = int_to_ptr.vmem [resolvable:$true] %s269
      %272 = dma.vmem_to_hbm [thread:$0]  %s270, 256, %s3, [#allocation4]
    $region29: #{tpu_custom_call.1} parent=1 // pred_fallthru
      _
    // Predicated region
    $region30: #{tpu_custom_call.1} parent=1 // pred_check
      _
    $region31: #{tpu_custom_call.1} parent=1 // pred_check_branch
      %274 = sbr.rel (0) target = $region33
    $region32: #{tpu_custom_call.1} parent=1 // pred_region
      %275 = dma.done [#allocation4], 256
    $region33: #{tpu_custom_call.1} parent=1 // pred_fallthru
      _
    %276 = vsyncpa [#allocation3], 1
    %277 = vsyncpa [#allocation8], 1
    %278 = vsyncpa [#allocation4], 1
    %279 = vsyncpa [#allocation5], 1

</llo_original>
